<compile_context>
chip_gen: v7x
topology: tpu7x:2x2x1
jax: 0.10.0
libtpu: 0.0.40
codegen_flags: <defaults>
</compile_context>

<pallas_src>
import math

import jax
import jax.numpy as jnp
from jax.experimental import pallas as pl
from jax.experimental.pallas import tpu as pltpu

NEG_SLOPE = 0.01   # nn.LeakyReLU default negative_slope
TB = 8             # diffusion steps (batch rows) per grid step, sublane-aligned


def diffusion_embedding_kernel(lo_ref, hi_ref,                    # scalar prefetch (SMEM)
                               frac_ref, enc_ref,
                               w1_ref, b1_ref, w2_ref, b2_ref,
                               out_ref, x_scr):
    # lo_ref / hi_ref : (B_pad,) int32 in SMEM  -- floor/ceil indices into the table
    # frac_ref        : (TB, 1)  f32            -- lerp fraction (0 for integer steps)
    # enc_ref         : (S, C)   f32            -- full encoding table, VMEM resident
    # w1_ref / w2_ref : (C, C)   f32            -- Linear weights, pre-transposed to (in, out)
    # b1_ref / b2_ref : (1, C)   f32
    # out_ref         : (TB, C)  f32
    # x_scr           : VMEM (TB, C) f32        -- gathered / lerped embeddings
    base = pl.program_id(0) * TB

    # ---- embedding gather + lerp, entirely in-kernel (TB is small & static) ----
    for r in range(TB):
        lo = lo_ref[base + r]
        hi = hi_ref[base + r]
        low = enc_ref[pl.ds(lo, 1), :]                      # (1, C)
        high = enc_ref[pl.ds(hi, 1), :]                     # (1, C)
        x_scr[pl.ds(r, 1), :] = low + (high - low) * frac_ref[pl.ds(r, 1), :]

    x = x_scr[...]                                          # (TB, C)

    # ---- projection1 -> LeakyReLU -> residual ----
    h = jnp.dot(x, w1_ref[...], preferred_element_type=jnp.float32) + b1_ref[...]
    x = jnp.where(h > 0, h, NEG_SLOPE * h) + x

    # ---- projection2 -> LeakyReLU -> residual ----
    h = jnp.dot(x, w2_ref[...], preferred_element_type=jnp.float32) + b2_ref[...]
    out_ref[...] = (jnp.where(h > 0, h, NEG_SLOPE * h) + x).astype(out_ref.dtype)


def build_encoding(num_diffusion_steps, num_channels):
    """Matches DiffusionEmbedding._build_encoding (init-time buffer, built once)."""
    steps = jnp.arange(num_diffusion_steps, dtype=jnp.float32)[:, None]
    dims = jnp.arange(num_channels // 2, dtype=jnp.float32)[None, :]
    enc = 2.0 * math.pi * steps * jnp.exp(-math.log(2.0) * dims)
    return jnp.concatenate([jnp.sin(enc), jnp.cos(enc)], axis=1)   # (S, C)


def diffusion_embedding(diffusion_step, encoding, w1, b1, w2, b2):
    """diffusion_step: () or (B,), int or float.  encoding: (S, C).
    w1, w2: (C, C) PyTorch Linear layout (out, in).  b1, b2: (C,).
    Returns diffusion_step.shape + (C,)."""
    S, C = encoding.shape
    steps = jnp.reshape(diffusion_step, (-1,))
    B = steps.shape[0]

    if jnp.issubdtype(steps.dtype, jnp.integer):
        lo = steps.astype(jnp.int32)
        hi = lo
        frac = jnp.zeros((B,), jnp.float32)
    else:
        t = steps.astype(jnp.float32)
        lo = jnp.floor(t).astype(jnp.int32)
        hi = jnp.ceil(t).astype(jnp.int32)
        frac = t - lo.astype(jnp.float32)

    # pad batch to a multiple of TB; padded rows gather table row 0 and are sliced off
    B_pad = TB * pl.cdiv(B, TB)
    pad = B_pad - B
    lo = jnp.pad(lo, (0, pad))
    hi = jnp.pad(hi, (0, pad))
    frac = jnp.pad(frac, (0, pad)).reshape(B_pad, 1)

    w1_k = jnp.transpose(w1)                 # (C_in, C_out): y = x @ W.T in torch
    w2_k = jnp.transpose(w2)
    b1_k = b1.reshape(1, C)
    b2_k = b2.reshape(1, C)

    out = pl.pallas_call(
        diffusion_embedding_kernel,
        out_shape=jax.ShapeDtypeStruct((B_pad, C), jnp.float32),
        grid_spec=pltpu.PrefetchScalarGridSpec(
            num_scalar_prefetch=2,                                  # lo, hi -> SMEM
            grid=(B_pad // TB,),
            in_specs=[
                pl.BlockSpec((TB, 1), lambda i, lo, hi: (i, 0)),    # frac
                pl.BlockSpec((S, C), lambda i, lo, hi: (0, 0)),     # encoding table (resident)
                pl.BlockSpec((C, C), lambda i, lo, hi: (0, 0)),     # W1 (in, out)
                pl.BlockSpec((1, C), lambda i, lo, hi: (0, 0)),     # b1
                pl.BlockSpec((C, C), lambda i, lo, hi: (0, 0)),     # W2 (in, out)
                pl.BlockSpec((1, C), lambda i, lo, hi: (0, 0)),     # b2
            ],
            out_specs=pl.BlockSpec((TB, C), lambda i, lo, hi: (i, 0)),
            scratch_shapes=[pltpu.VMEM((TB, C), jnp.float32)],
        ),
        compiler_params=pltpu.CompilerParams(
            dimension_semantics=("parallel",)),                     # batch tiles -> v7x megacore
    )(lo, hi, frac, encoding, w1_k, b1_k, w2_k, b2_k)

    out = out[:B]
    return out.reshape(tuple(diffusion_step.shape) + (C,))


def reference_forward(diffusion_step, encoding, w1, b1, w2, b2):
    """Pure-JAX reference with identical semantics to the PyTorch module."""
    if jnp.issubdtype(diffusion_step.dtype, jnp.integer):
        x = encoding[diffusion_step]
    else:
        lo = jnp.floor(diffusion_step).astype(jnp.int32)
        hi = jnp.ceil(diffusion_step).astype(jnp.int32)
        x = encoding[lo] + (encoding[hi] - encoding[lo]) * \
            (diffusion_step - lo.astype(jnp.float32))[..., None]
    h = x @ w1.T + b1
    x = jnp.where(h > 0, h, NEG_SLOPE * h) + x
    h = x @ w2.T + b2
    x = jnp.where(h > 0, h, NEG_SLOPE * h) + x
    return x


if __name__ == "__main__":
    num_diffusion_steps, num_channels, batch = 50, 128, 4
    key = jax.random.PRNGKey(0)
    k1, k2, k3, k4, k5, k6 = jax.random.split(key, 6)

    encoding = build_encoding(num_diffusion_steps, num_channels)
    scale = 1.0 / math.sqrt(num_channels)
    w1 = jax.random.uniform(k1, (num_channels, num_channels), jnp.float32, -scale, scale)
    b1 = jax.random.uniform(k2, (num_channels,), jnp.float32, -scale, scale)
    w2 = jax.random.uniform(k3, (num_channels, num_channels), jnp.float32, -scale, scale)
    b2 = jax.random.uniform(k4, (num_channels,), jnp.float32, -scale, scale)

    # ---- integer diffusion steps (table-lookup path) ----
    t_int = jax.random.randint(k5, (batch,), 0, num_diffusion_steps, jnp.int32)
    y_int = diffusion_embedding(t_int, encoding, w1, b1, w2, b2)
    jax.block_until_ready(y_int)
    y_int_ref = reference_forward(t_int, encoding, w1, b1, w2, b2)
    assert y_int.shape == (batch, num_channels), y_int.shape
    assert jnp.allclose(y_int, y_int_ref, atol=1e-4, rtol=1e-4), \
        float(jnp.max(jnp.abs(y_int - y_int_ref)))

    # ---- float diffusion steps (lerp path) ----
    t_flt = jax.random.uniform(k6, (batch,), jnp.float32, 0.0,
                               float(num_diffusion_steps - 1))
    y_flt = diffusion_embedding(t_flt, encoding, w1, b1, w2, b2)
    jax.block_until_ready(y_flt)
    y_flt_ref = reference_forward(t_flt, encoding, w1, b1, w2, b2)
    assert y_flt.shape == (batch, num_channels), y_flt.shape
    assert jnp.allclose(y_flt, y_flt_ref, atol=1e-4, rtol=1e-4), \
        float(jnp.max(jnp.abs(y_flt - y_flt_ref)))

    print("KERNEL_OK")
</pallas_src>

<mosaic_0001>
module attributes {stable_mosaic.version = 11 : i64} {
  func.func @diffusion_embedding_kernel(%arg0: i32, %arg1: memref<8xi32, #tpu.memory_space<smem>>, %arg2: memref<8xi32, #tpu.memory_space<smem>>, %arg3: memref<8x1xf32, #tpu.memory_space<vmem>>, %arg4: memref<50x128xf32, #tpu.memory_space<vmem>>, %arg5: memref<128x128xf32, #tpu.memory_space<vmem>>, %arg6: memref<1x128xf32, #tpu.memory_space<vmem>>, %arg7: memref<128x128xf32, #tpu.memory_space<vmem>>, %arg8: memref<1x128xf32, #tpu.memory_space<vmem>>, %arg9: memref<8x128xf32, #tpu.memory_space<vmem>>, %arg10: memref<8x128xf32, #tpu.memory_space<vmem>>) attributes {dimension_semantics = [#tpu.dimension_semantics<parallel>], iteration_bounds = array<i64: 1>, scalar_prefetch = 2 : i64, scratch_operands = 1 : i64, tpu.core_type = #tpu.core_type<tc>, window_params = [{transform_indices = @transform_0, window_bounds = array<i64: 8, 1>}, {pipeline_mode = #tpu.pipeline_mode<synchronous>, transform_indices = @transform_1, window_bounds = array<i64: 50, 128>}, {pipeline_mode = #tpu.pipeline_mode<synchronous>, transform_indices = @transform_2, window_bounds = array<i64: 128, 128>}, {pipeline_mode = #tpu.pipeline_mode<synchronous>, transform_indices = @transform_3, window_bounds = array<i64: 1, 128>}, {pipeline_mode = #tpu.pipeline_mode<synchronous>, transform_indices = @transform_4, window_bounds = array<i64: 128, 128>}, {pipeline_mode = #tpu.pipeline_mode<synchronous>, transform_indices = @transform_5, window_bounds = array<i64: 1, 128>}, {transform_indices = @transform_6, window_bounds = array<i64: 8, 128>}]} {
    %c8_i32 = arith.constant 8 : i32
    %0 = arith.muli %arg0, %c8_i32 : i32
    %c0_i32 = arith.constant 0 : i32
    %1 = arith.addi %0, %c0_i32 : i32
    %2 = arith.index_cast %1 : i32 to index
    %3 = memref.load %arg1[%2] : memref<8xi32, #tpu.memory_space<smem>>
    %c0_i32_0 = arith.constant 0 : i32
    %4 = arith.addi %0, %c0_i32_0 : i32
    %5 = arith.index_cast %4 : i32 to index
    %6 = memref.load %arg2[%5] : memref<8xi32, #tpu.memory_space<smem>>
    %7 = arith.index_cast %3 : i32 to index
    %c0 = arith.constant 0 : index
    %8 = vector.load %arg4[%7, %c0] : memref<50x128xf32, #tpu.memory_space<vmem>>, vector<1x128xf32>
    %9 = arith.index_cast %6 : i32 to index
    %c0_1 = arith.constant 0 : index
    %10 = vector.load %arg4[%9, %c0_1] : memref<50x128xf32, #tpu.memory_space<vmem>>, vector<1x128xf32>
    %11 = arith.subf %10, %8 : vector<1x128xf32>
    %c0_2 = arith.constant 0 : index
    %c0_3 = arith.constant 0 : index
    %12 = vector.load %arg3[%c0_2, %c0_3] : memref<8x1xf32, #tpu.memory_space<vmem>>, vector<1x1xf32>
    %13 = vector.broadcast %12 : vector<1x1xf32> to vector<1x128xf32>
    %14 = arith.mulf %11, %13 : vector<1x128xf32>
    %15 = arith.addf %8, %14 : vector<1x128xf32>
    %c0_4 = arith.constant 0 : index
    %c0_5 = arith.constant 0 : index
    %16 = vector.load %arg10[%c0_4, %c0_5] : memref<8x128xf32, #tpu.memory_space<vmem>>, vector<1x128xf32>
    tpu.vector_store %arg10[%c0_4, %c0_5], %15 {strides = array<i32>} : memref<8x128xf32, #tpu.memory_space<vmem>>, vector<1x128xf32>,
    %c1_i32 = arith.constant 1 : i32
    %17 = arith.addi %0, %c1_i32 : i32
    %18 = arith.index_cast %17 : i32 to index
    %19 = memref.load %arg1[%18] : memref<8xi32, #tpu.memory_space<smem>>
    %c1_i32_6 = arith.constant 1 : i32
    %20 = arith.addi %0, %c1_i32_6 : i32
    %21 = arith.index_cast %20 : i32 to index
    %22 = memref.load %arg2[%21] : memref<8xi32, #tpu.memory_space<smem>>
    %23 = arith.index_cast %19 : i32 to index
    %c0_7 = arith.constant 0 : index
    %24 = vector.load %arg4[%23, %c0_7] : memref<50x128xf32, #tpu.memory_space<vmem>>, vector<1x128xf32>
    %25 = arith.index_cast %22 : i32 to index
    %c0_8 = arith.constant 0 : index
    %26 = vector.load %arg4[%25, %c0_8] : memref<50x128xf32, #tpu.memory_space<vmem>>, vector<1x128xf32>
    %27 = arith.subf %26, %24 : vector<1x128xf32>
    %c1 = arith.constant 1 : index
    %c0_9 = arith.constant 0 : index
    %28 = vector.load %arg3[%c1, %c0_9] : memref<8x1xf32, #tpu.memory_space<vmem>>, vector<1x1xf32>
    %29 = vector.broadcast %28 : vector<1x1xf32> to vector<1x128xf32>
    %30 = arith.mulf %27, %29 : vector<1x128xf32>
    %31 = arith.addf %24, %30 : vector<1x128xf32>
    %c1_10 = arith.constant 1 : index
    %c0_11 = arith.constant 0 : index
    %32 = vector.load %arg10[%c1_10, %c0_11] : memref<8x128xf32, #tpu.memory_space<vmem>>, vector<1x128xf32>
    tpu.vector_store %arg10[%c1_10, %c0_11], %31 {strides = array<i32>} : memref<8x128xf32, #tpu.memory_space<vmem>>, vector<1x128xf32>,
    %c2_i32 = arith.constant 2 : i32
    %33 = arith.addi %0, %c2_i32 : i32
    %34 = arith.index_cast %33 : i32 to index
    %35 = memref.load %arg1[%34] : memref<8xi32, #tpu.memory_space<smem>>
    %c2_i32_12 = arith.constant 2 : i32
    %36 = arith.addi %0, %c2_i32_12 : i32
    %37 = arith.index_cast %36 : i32 to index
    %38 = memref.load %arg2[%37] : memref<8xi32, #tpu.memory_space<smem>>
    %39 = arith.index_cast %35 : i32 to index
    %c0_13 = arith.constant 0 : index
    %40 = vector.load %arg4[%39, %c0_13] : memref<50x128xf32, #tpu.memory_space<vmem>>, vector<1x128xf32>
    %41 = arith.index_cast %38 : i32 to index
    %c0_14 = arith.constant 0 : index
    %42 = vector.load %arg4[%41, %c0_14] : memref<50x128xf32, #tpu.memory_space<vmem>>, vector<1x128xf32>
    %43 = arith.subf %42, %40 : vector<1x128xf32>
    %c2 = arith.constant 2 : index
    %c0_15 = arith.constant 0 : index
    %44 = vector.load %arg3[%c2, %c0_15] : memref<8x1xf32, #tpu.memory_space<vmem>>, vector<1x1xf32>
    %45 = vector.broadcast %44 : vector<1x1xf32> to vector<1x128xf32>
    %46 = arith.mulf %43, %45 : vector<1x128xf32>
    %47 = arith.addf %40, %46 : vector<1x128xf32>
    %c2_16 = arith.constant 2 : index
    %c0_17 = arith.constant 0 : index
    %48 = vector.load %arg10[%c2_16, %c0_17] : memref<8x128xf32, #tpu.memory_space<vmem>>, vector<1x128xf32>
    tpu.vector_store %arg10[%c2_16, %c0_17], %47 {strides = array<i32>} : memref<8x128xf32, #tpu.memory_space<vmem>>, vector<1x128xf32>,
    %c3_i32 = arith.constant 3 : i32
    %49 = arith.addi %0, %c3_i32 : i32
    %50 = arith.index_cast %49 : i32 to index
    %51 = memref.load %arg1[%50] : memref<8xi32, #tpu.memory_space<smem>>
    %c3_i32_18 = arith.constant 3 : i32
    %52 = arith.addi %0, %c3_i32_18 : i32
    %53 = arith.index_cast %52 : i32 to index
    %54 = memref.load %arg2[%53] : memref<8xi32, #tpu.memory_space<smem>>
    %55 = arith.index_cast %51 : i32 to index
    %c0_19 = arith.constant 0 : index
    %56 = vector.load %arg4[%55, %c0_19] : memref<50x128xf32, #tpu.memory_space<vmem>>, vector<1x128xf32>
    %57 = arith.index_cast %54 : i32 to index
    %c0_20 = arith.constant 0 : index
    %58 = vector.load %arg4[%57, %c0_20] : memref<50x128xf32, #tpu.memory_space<vmem>>, vector<1x128xf32>
    %59 = arith.subf %58, %56 : vector<1x128xf32>
    %c3 = arith.constant 3 : index
    %c0_21 = arith.constant 0 : index
    %60 = vector.load %arg3[%c3, %c0_21] : memref<8x1xf32, #tpu.memory_space<vmem>>, vector<1x1xf32>
    %61 = vector.broadcast %60 : vector<1x1xf32> to vector<1x128xf32>
    %62 = arith.mulf %59, %61 : vector<1x128xf32>
    %63 = arith.addf %56, %62 : vector<1x128xf32>
    %c3_22 = arith.constant 3 : index
    %c0_23 = arith.constant 0 : index
    %64 = vector.load %arg10[%c3_22, %c0_23] : memref<8x128xf32, #tpu.memory_space<vmem>>, vector<1x128xf32>
    tpu.vector_store %arg10[%c3_22, %c0_23], %63 {strides = array<i32>} : memref<8x128xf32, #tpu.memory_space<vmem>>, vector<1x128xf32>,
    %c4_i32 = arith.constant 4 : i32
    %65 = arith.addi %0, %c4_i32 : i32
    %66 = arith.index_cast %65 : i32 to index
    %67 = memref.load %arg1[%66] : memref<8xi32, #tpu.memory_space<smem>>
    %c4_i32_24 = arith.constant 4 : i32
    %68 = arith.addi %0, %c4_i32_24 : i32
    %69 = arith.index_cast %68 : i32 to index
    %70 = memref.load %arg2[%69] : memref<8xi32, #tpu.memory_space<smem>>
    %71 = arith.index_cast %67 : i32 to index
    %c0_25 = arith.constant 0 : index
    %72 = vector.load %arg4[%71, %c0_25] : memref<50x128xf32, #tpu.memory_space<vmem>>, vector<1x128xf32>
    %73 = arith.index_cast %70 : i32 to index
    %c0_26 = arith.constant 0 : index
    %74 = vector.load %arg4[%73, %c0_26] : memref<50x128xf32, #tpu.memory_space<vmem>>, vector<1x128xf32>
    %75 = arith.subf %74, %72 : vector<1x128xf32>
    %c4 = arith.constant 4 : index
    %c0_27 = arith.constant 0 : index
    %76 = vector.load %arg3[%c4, %c0_27] : memref<8x1xf32, #tpu.memory_space<vmem>>, vector<1x1xf32>
    %77 = vector.broadcast %76 : vector<1x1xf32> to vector<1x128xf32>
    %78 = arith.mulf %75, %77 : vector<1x128xf32>
    %79 = arith.addf %72, %78 : vector<1x128xf32>
    %c4_28 = arith.constant 4 : index
    %c0_29 = arith.constant 0 : index
    %80 = vector.load %arg10[%c4_28, %c0_29] : memref<8x128xf32, #tpu.memory_space<vmem>>, vector<1x128xf32>
    tpu.vector_store %arg10[%c4_28, %c0_29], %79 {strides = array<i32>} : memref<8x128xf32, #tpu.memory_space<vmem>>, vector<1x128xf32>,
    %c5_i32 = arith.constant 5 : i32
    %81 = arith.addi %0, %c5_i32 : i32
    %82 = arith.index_cast %81 : i32 to index
    %83 = memref.load %arg1[%82] : memref<8xi32, #tpu.memory_space<smem>>
    %c5_i32_30 = arith.constant 5 : i32
    %84 = arith.addi %0, %c5_i32_30 : i32
    %85 = arith.index_cast %84 : i32 to index
    %86 = memref.load %arg2[%85] : memref<8xi32, #tpu.memory_space<smem>>
    %87 = arith.index_cast %83 : i32 to index
    %c0_31 = arith.constant 0 : index
    %88 = vector.load %arg4[%87, %c0_31] : memref<50x128xf32, #tpu.memory_space<vmem>>, vector<1x128xf32>
    %89 = arith.index_cast %86 : i32 to index
    %c0_32 = arith.constant 0 : index
    %90 = vector.load %arg4[%89, %c0_32] : memref<50x128xf32, #tpu.memory_space<vmem>>, vector<1x128xf32>
    %91 = arith.subf %90, %88 : vector<1x128xf32>
    %c5 = arith.constant 5 : index
    %c0_33 = arith.constant 0 : index
    %92 = vector.load %arg3[%c5, %c0_33] : memref<8x1xf32, #tpu.memory_space<vmem>>, vector<1x1xf32>
    %93 = vector.broadcast %92 : vector<1x1xf32> to vector<1x128xf32>
    %94 = arith.mulf %91, %93 : vector<1x128xf32>
    %95 = arith.addf %88, %94 : vector<1x128xf32>
    %c5_34 = arith.constant 5 : index
    %c0_35 = arith.constant 0 : index
    %96 = vector.load %arg10[%c5_34, %c0_35] : memref<8x128xf32, #tpu.memory_space<vmem>>, vector<1x128xf32>
    tpu.vector_store %arg10[%c5_34, %c0_35], %95 {strides = array<i32>} : memref<8x128xf32, #tpu.memory_space<vmem>>, vector<1x128xf32>,
    %c6_i32 = arith.constant 6 : i32
    %97 = arith.addi %0, %c6_i32 : i32
    %98 = arith.index_cast %97 : i32 to index
    %99 = memref.load %arg1[%98] : memref<8xi32, #tpu.memory_space<smem>>
    %c6_i32_36 = arith.constant 6 : i32
    %100 = arith.addi %0, %c6_i32_36 : i32
    %101 = arith.index_cast %100 : i32 to index
    %102 = memref.load %arg2[%101] : memref<8xi32, #tpu.memory_space<smem>>
    %103 = arith.index_cast %99 : i32 to index
    %c0_37 = arith.constant 0 : index
    %104 = vector.load %arg4[%103, %c0_37] : memref<50x128xf32, #tpu.memory_space<vmem>>, vector<1x128xf32>
    %105 = arith.index_cast %102 : i32 to index
    %c0_38 = arith.constant 0 : index
    %106 = vector.load %arg4[%105, %c0_38] : memref<50x128xf32, #tpu.memory_space<vmem>>, vector<1x128xf32>
    %107 = arith.subf %106, %104 : vector<1x128xf32>
    %c6 = arith.constant 6 : index
    %c0_39 = arith.constant 0 : index
    %108 = vector.load %arg3[%c6, %c0_39] : memref<8x1xf32, #tpu.memory_space<vmem>>, vector<1x1xf32>
    %109 = vector.broadcast %108 : vector<1x1xf32> to vector<1x128xf32>
    %110 = arith.mulf %107, %109 : vector<1x128xf32>
    %111 = arith.addf %104, %110 : vector<1x128xf32>
    %c6_40 = arith.constant 6 : index
    %c0_41 = arith.constant 0 : index
    %112 = vector.load %arg10[%c6_40, %c0_41] : memref<8x128xf32, #tpu.memory_space<vmem>>, vector<1x128xf32>
    tpu.vector_store %arg10[%c6_40, %c0_41], %111 {strides = array<i32>} : memref<8x128xf32, #tpu.memory_space<vmem>>, vector<1x128xf32>,
    %c7_i32 = arith.constant 7 : i32
    %113 = arith.addi %0, %c7_i32 : i32
    %114 = arith.index_cast %113 : i32 to index
    %115 = memref.load %arg1[%114] : memref<8xi32, #tpu.memory_space<smem>>
    %c7_i32_42 = arith.constant 7 : i32
    %116 = arith.addi %0, %c7_i32_42 : i32
    %117 = arith.index_cast %116 : i32 to index
    %118 = memref.load %arg2[%117] : memref<8xi32, #tpu.memory_space<smem>>
    %119 = arith.index_cast %115 : i32 to index
    %c0_43 = arith.constant 0 : index
    %120 = vector.load %arg4[%119, %c0_43] : memref<50x128xf32, #tpu.memory_space<vmem>>, vector<1x128xf32>
    %121 = arith.index_cast %118 : i32 to index
    %c0_44 = arith.constant 0 : index
    %122 = vector.load %arg4[%121, %c0_44] : memref<50x128xf32, #tpu.memory_space<vmem>>, vector<1x128xf32>
    %123 = arith.subf %122, %120 : vector<1x128xf32>
    %c7 = arith.constant 7 : index
    %c0_45 = arith.constant 0 : index
    %124 = vector.load %arg3[%c7, %c0_45] : memref<8x1xf32, #tpu.memory_space<vmem>>, vector<1x1xf32>
    %125 = vector.broadcast %124 : vector<1x1xf32> to vector<1x128xf32>
    %126 = arith.mulf %123, %125 : vector<1x128xf32>
    %127 = arith.addf %120, %126 : vector<1x128xf32>
    %c7_46 = arith.constant 7 : index
    %c0_47 = arith.constant 0 : index
    %128 = vector.load %arg10[%c7_46, %c0_47] : memref<8x128xf32, #tpu.memory_space<vmem>>, vector<1x128xf32>
    tpu.vector_store %arg10[%c7_46, %c0_47], %127 {strides = array<i32>} : memref<8x128xf32, #tpu.memory_space<vmem>>, vector<1x128xf32>,
    %c0_48 = arith.constant 0 : index
    %c0_49 = arith.constant 0 : index
    %129 = vector.load %arg10[%c0_48, %c0_49] : memref<8x128xf32, #tpu.memory_space<vmem>>, vector<8x128xf32>
    %c0_50 = arith.constant 0 : index
    %c0_51 = arith.constant 0 : index
    %130 = vector.load %arg5[%c0_50, %c0_51] : memref<128x128xf32, #tpu.memory_space<vmem>>, vector<128x128xf32>
    %cst = arith.constant dense<0.000000e+00> : vector<8x128xf32>
    %131 = tpu.matmul %129, %130, %cst {dimension_numbers = #tpu.dot_dimension_numbers<[1], [0], [0], [1], [0, 0, 1, 1], [], []>} : vector<8x128xf32>, vector<128x128xf32>, vector<8x128xf32> -> vector<8x128xf32>
    %c0_52 = arith.constant 0 : index
    %c0_53 = arith.constant 0 : index
    %132 = vector.load %arg6[%c0_52, %c0_53] : memref<1x128xf32, #tpu.memory_space<vmem>>, vector<1x128xf32>
    %133 = vector.broadcast %132 : vector<1x128xf32> to vector<8x128xf32>
    %134 = arith.addf %131, %133 : vector<8x128xf32>
    %cst_54 = arith.constant 0.000000e+00 : f32
    %135 = vector.broadcast %cst_54 : f32 to vector<8x128xf32>
    %136 = arith.cmpf ogt, %134, %135 : vector<8x128xf32>
    %cst_55 = arith.constant 0.00999999977 : f32
    %137 = vector.broadcast %cst_55 : f32 to vector<8x128xf32>
    %138 = arith.mulf %137, %134 : vector<8x128xf32>
    %139 = arith.select %136, %134, %138 : vector<8x128xi1>, vector<8x128xf32>
    %140 = arith.addf %139, %129 : vector<8x128xf32>
    %c0_56 = arith.constant 0 : index
    %c0_57 = arith.constant 0 : index
    %141 = vector.load %arg7[%c0_56, %c0_57] : memref<128x128xf32, #tpu.memory_space<vmem>>, vector<128x128xf32>
    %cst_58 = arith.constant dense<0.000000e+00> : vector<8x128xf32>
    %142 = tpu.matmul %140, %141, %cst_58 {dimension_numbers = #tpu.dot_dimension_numbers<[1], [0], [0], [1], [0, 0, 1, 1], [], []>} : vector<8x128xf32>, vector<128x128xf32>, vector<8x128xf32> -> vector<8x128xf32>
    %c0_59 = arith.constant 0 : index
    %c0_60 = arith.constant 0 : index
    %143 = vector.load %arg8[%c0_59, %c0_60] : memref<1x128xf32, #tpu.memory_space<vmem>>, vector<1x128xf32>
    %144 = vector.broadcast %143 : vector<1x128xf32> to vector<8x128xf32>
    %145 = arith.addf %142, %144 : vector<8x128xf32>
    %cst_61 = arith.constant 0.000000e+00 : f32
    %146 = vector.broadcast %cst_61 : f32 to vector<8x128xf32>
    %147 = arith.cmpf ogt, %145, %146 : vector<8x128xf32>
    %cst_62 = arith.constant 0.00999999977 : f32
    %148 = vector.broadcast %cst_62 : f32 to vector<8x128xf32>
    %149 = arith.mulf %148, %145 : vector<8x128xf32>
    %150 = arith.select %147, %145, %149 : vector<8x128xi1>, vector<8x128xf32>
    %151 = arith.addf %150, %140 : vector<8x128xf32>
    %c0_63 = arith.constant 0 : index
    %c0_64 = arith.constant 0 : index
    %152 = vector.load %arg9[%c0_63, %c0_64] : memref<8x128xf32, #tpu.memory_space<vmem>>, vector<8x128xf32>
    tpu.vector_store %arg9[%c0_63, %c0_64], %151 {strides = array<i32>} : memref<8x128xf32, #tpu.memory_space<vmem>>, vector<8x128xf32>,
    return
  }
  func.func @transform_0(%arg0: i32, %arg1: memref<8xi32, #tpu.memory_space<smem>>, %arg2: memref<8xi32, #tpu.memory_space<smem>>) -> (i32, i32) {
    %c0_i32 = arith.constant 0 : i32
    %c0_i32_0 = arith.constant 0 : i32
    return %arg0, %c0_i32 : i32, i32
  }
  func.func @transform_1(%arg0: i32, %arg1: memref<8xi32, #tpu.memory_space<smem>>, %arg2: memref<8xi32, #tpu.memory_space<smem>>) -> (i32, i32) {
    %c0_i32 = arith.constant 0 : i32
    %c0_i32_0 = arith.constant 0 : i32
    %c0_i32_1 = arith.constant 0 : i32
    return %c0_i32, %c0_i32_0 : i32, i32
  }
  func.func @transform_2(%arg0: i32, %arg1: memref<8xi32, #tpu.memory_space<smem>>, %arg2: memref<8xi32, #tpu.memory_space<smem>>) -> (i32, i32) {
    %c0_i32 = arith.constant 0 : i32
    %c0_i32_0 = arith.constant 0 : i32
    %c0_i32_1 = arith.constant 0 : i32
    return %c0_i32, %c0_i32_0 : i32, i32
  }
  func.func @transform_3(%arg0: i32, %arg1: memref<8xi32, #tpu.memory_space<smem>>, %arg2: memref<8xi32, #tpu.memory_space<smem>>) -> (i32, i32) {
    %c0_i32 = arith.constant 0 : i32
    %c0_i32_0 = arith.constant 0 : i32
    %c0_i32_1 = arith.constant 0 : i32
    return %c0_i32, %c0_i32_0 : i32, i32
  }
  func.func @transform_4(%arg0: i32, %arg1: memref<8xi32, #tpu.memory_space<smem>>, %arg2: memref<8xi32, #tpu.memory_space<smem>>) -> (i32, i32) {
    %c0_i32 = arith.constant 0 : i32
    %c0_i32_0 = arith.constant 0 : i32
    %c0_i32_1 = arith.constant 0 : i32
    return %c0_i32, %c0_i32_0 : i32, i32
  }
  func.func @transform_5(%arg0: i32, %arg1: memref<8xi32, #tpu.memory_space<smem>>, %arg2: memref<8xi32, #tpu.memory_space<smem>>) -> (i32, i32) {
    %c0_i32 = arith.constant 0 : i32
    %c0_i32_0 = arith.constant 0 : i32
    %c0_i32_1 = arith.constant 0 : i32
    return %c0_i32, %c0_i32_0 : i32, i32
  }
  func.func @transform_6(%arg0: i32, %arg1: memref<8xi32, #tpu.memory_space<smem>>, %arg2: memref<8xi32, #tpu.memory_space<smem>>) -> (i32, i32) {
    %c0_i32 = arith.constant 0 : i32
    %c0_i32_0 = arith.constant 0 : i32
    return %arg0, %c0_i32 : i32, i32
  }
}

</mosaic_0001>

<llo_original>
// kernel: tpu_custom_call.1
$region0: #{tpu_custom_call.1}
  #allocation0 [shape = 'u32[]', space=smem, size = 0x4, offset = 0x4, fixed_abs, tag = 'smem constant byte address 0x4 - core index']
  #allocation1 [shape = 'u32[144,128]{1,0:T(1,128)}', space=vmem, size = 0x12000, scoped, tag = 'internal scratch']
  #allocation2 [shape = 'f32[8,128]{1,0:T(8,128)}', space=vmem, size = 0x1000, scoped, tag = 'scratch operand']
  #allocation3 [shape = 's32[1]{0}', space=sflag, size = 0x4, scoped, tag = 'scoped memory for tpu_custom_call.1']
  #allocation4 [shape = 'u8[512]{0}', space=smem, size = 0x200, scoped, tag = 'prefetched SMEM operand 0']
  #allocation5 [shape = 'u8[512]{0}', space=smem, size = 0x200, scoped, tag = 'prefetched SMEM operand 1']
  %s0 = inlined_call_operand.vmem [shape: s32[8], index: 0, kind: input, shape index: {}]
  %s1 = inlined_call_operand.vmem [shape: s32[8], index: 1, kind: input, shape index: {}]
  %s2 = inlined_call_operand.vmem [shape: f32[8,1], index: 2, kind: input, shape index: {}]
  %s3 = inlined_call_operand.hbm [shape: f32[50,128], index: 3, kind: input, shape index: {}]
  %s4 = inlined_call_operand.hbm [shape: f32[128,128], index: 4, kind: input, shape index: {}]
  %s5 = inlined_call_operand.vmem [shape: f32[1,128], index: 5, kind: input, shape index: {}]
  %s6 = inlined_call_operand.hbm [shape: f32[128,128], index: 6, kind: input, shape index: {}]
  %s7 = inlined_call_operand.vmem [shape: f32[1,128], index: 7, kind: input, shape index: {}]
  %s8 = inlined_call_operand.hbm [shape: f32[8,128], index: 8, kind: output, shape index: {}]
  %s9 = sld [smem:[#allocation0]]
  $region46: #{tpu_custom_call.1} parent=0
    _
  %s11 = ssub.s32 1, %s9
  %s12 = scalar_select 0, %s11, %s9
  %s13 = sshll.u32 %s0, 4
  %s14 = int_to_ptr.vmem [resolvable:$true] %s13
  %16 = dma.vmem_to_smem %s14, 16, [#allocation4], [#allocation3]
  %s17 = sshll.u32 %s1, 4
  %s18 = int_to_ptr.vmem [resolvable:$true] %s17
  %20 = dma.vmem_to_smem %s18, 16, [#allocation5], [#allocation3]
  %21 = dma.done [#allocation3], 32
  %22 = sfence
  $region1: #{tpu_custom_call.1} parent=0
    #allocation6 [shape = 'u8[28672]{0}', space=vmem, size = 0x7000, scoped, tag = 'input window, operand 3, single buffered']
    #allocation7 [shape = 's32[1]{0}', space=sflag, size = 0x4, scoped, tag = 'scoped memory for tpu_custom_call.1']
    #allocation8 [shape = 's32[1]{0}', space=sflag, size = 0x4, scoped, tag = 'scoped memory for tpu_custom_call.1']
    #allocation9 [shape = 'u8[65536]{0}', space=vmem, size = 0x10000, scoped, tag = 'input window, operand 4, single buffered']
    #allocation10 [shape = 's32[1]{0}', space=sflag, size = 0x4, scoped, tag = 'scoped memory for tpu_custom_call.1']
    #allocation11 [shape = 'u8[65536]{0}', space=vmem, size = 0x10000, scoped, tag = 'input window, operand 6, single buffered']
    #allocation12 [shape = 'u8[4096]{0}', space=vmem, size = 0x1000, scoped, tag = 'output window, operand 0, single buffered']
    %23 = vsyncpa [#allocation7], 0
    %24 = vsyncpa [#allocation10], 0
    %25 = vsyncpa [#allocation8], 0
    // Predicated region
    $region2: #{tpu_custom_call.1} parent=1 // pred_check
      _
    $region3: #{tpu_custom_call.1} parent=1 // pred_check_branch
      %27 = sbr.rel (0) target = $region5
    $region4: #{tpu_custom_call.1} parent=1 // pred_region
      _
    $region5: #{tpu_custom_call.1} parent=1 // pred_fallthru
      _
    // Predicated region
    $region6: #{tpu_custom_call.1} parent=1 // pred_check
      _
    $region7: #{tpu_custom_call.1} parent=1 // pred_check_branch
      %29 = sbr.rel (0) target = $region9
    $region8: #{tpu_custom_call.1} parent=1 // pred_region
      %s31 = ssub.s32 896, 896
      %32 = vsyncadd [#allocation7], %s31
      %s33 = sshll.u32 [#allocation6], 4
      %s34 = int_to_ptr.vmem [resolvable:$true] %s33
      %39 = dma.hbm_to_vmem [thread:$0]  %s3, 896, %s34, [#allocation7], 128, 128, 8
    $region9: #{tpu_custom_call.1} parent=1 // pred_fallthru
      _
    // Predicated region
    $region10: #{tpu_custom_call.1} parent=1 // pred_check
      _
    $region11: #{tpu_custom_call.1} parent=1 // pred_check_branch
      %41 = sbr.rel (0) target = $region13
    $region12: #{tpu_custom_call.1} parent=1 // pred_region
      %s43 = ssub.s32 2048, 2048
      %44 = vsyncadd [#allocation10], %s43
      %s45 = sshll.u32 [#allocation9], 4
      %s46 = int_to_ptr.vmem [resolvable:$true] %s45
      %51 = dma.hbm_to_vmem [thread:$0]  %s4, 2048, %s46, [#allocation10], 128, 128, 8
    $region13: #{tpu_custom_call.1} parent=1 // pred_fallthru
      _
    // Predicated region
    $region14: #{tpu_custom_call.1} parent=1 // pred_check
      _
    $region15: #{tpu_custom_call.1} parent=1 // pred_check_branch
      %53 = sbr.rel (0) target = $region17
    $region16: #{tpu_custom_call.1} parent=1 // pred_region
      _
    $region17: #{tpu_custom_call.1} parent=1 // pred_fallthru
      _
    // Predicated region
    $region18: #{tpu_custom_call.1} parent=1 // pred_check
      _
    $region19: #{tpu_custom_call.1} parent=1 // pred_check_branch
      %55 = sbr.rel (0) target = $region21
    $region20: #{tpu_custom_call.1} parent=1 // pred_region
      %s57 = ssub.s32 2048, 2048
      %58 = vsyncadd [#allocation10], %s57
      %s59 = sshll.u32 [#allocation11], 4
      %s60 = int_to_ptr.vmem [resolvable:$true] %s59
      %65 = dma.hbm_to_vmem [thread:$0]  %s6, 2048, %s60, [#allocation10], 128, 128, 8
    $region21: #{tpu_custom_call.1} parent=1 // pred_fallthru
      _
    // Predicated region
    $region22: #{tpu_custom_call.1} parent=1 // pred_check
      _
    $region23: #{tpu_custom_call.1} parent=1 // pred_check_branch
      %67 = sbr.rel (0) target = $region25
    $region24: #{tpu_custom_call.1} parent=1 // pred_region
      _
    $region25: #{tpu_custom_call.1} parent=1 // pred_fallthru
      _
    // Predicated region
    $region26: #{tpu_custom_call.1} parent=1 // pred_check
      _
    $region27: #{tpu_custom_call.1} parent=1 // pred_check_branch
      %69 = sbr.rel (0) target = $region29
    $region28: #{tpu_custom_call.1} parent=1 // pred_region
      %70 = dma.done [#allocation7], 896
    $region29: #{tpu_custom_call.1} parent=1 // pred_fallthru
      _
    // Predicated region
    $region30: #{tpu_custom_call.1} parent=1 // pred_check
      _
    $region31: #{tpu_custom_call.1} parent=1 // pred_check_branch
      %72 = sbr.rel (0) target = $region33
    $region32: #{tpu_custom_call.1} parent=1 // pred_region
      %73 = dma.done [#allocation10], 2048
    $region33: #{tpu_custom_call.1} parent=1 // pred_fallthru
      _
    // Predicated region
    $region34: #{tpu_custom_call.1} parent=1 // pred_check
      _
    $region35: #{tpu_custom_call.1} parent=1 // pred_check_branch
      %75 = sbr.rel (0) target = $region37
    $region36: #{tpu_custom_call.1} parent=1 // pred_region
      %76 = dma.done [#allocation10], 2048
    $region37: #{tpu_custom_call.1} parent=1 // pred_fallthru
      _
    %s77 = smul.u32 0, 8
    %s78 = sld [smem:[#allocation4 + %s77]]
    %s79 = sld [smem:[#allocation5 + %s77]]
    %s80 = scalar_lea.vmem [#allocation6], %s78
    %v81 = vld [vmem:[%s80] sm:$0x1]
    %s82 = scalar_lea.vmem [#allocation6], %s79
    %v83 = vld [vmem:[%s82] sm:$0x1]
    %v84 = vsub.f32 %v83, %v81
    %v85 = vld [vmem:[%s2] sm:$0x1]
    %87 = vset.pattern.permute.xlu0 0
    %88 = vperm.xlu0 %87, %v85
    %v89 = vpop.permute.xlu0 %88
    %v91 = vmul.f32 %v84, %v89
    %v92 = vadd.f32 %v81, %v91
    %93 = vst [vmem:[#allocation2] sm:$0x1] %v92
    %s94 = sadd.s32 %s77, 1
    %s95 = sld [smem:[#allocation4 + %s94]]
    %s96 = sld [smem:[#allocation5 + %s94]]
    %s97 = scalar_lea.vmem [#allocation6], %s95
    %v98 = vld [vmem:[%s97] sm:$0x1]
    %s99 = scalar_lea.vmem [#allocation6], %s96
    %v100 = vld [vmem:[%s99] sm:$0x1]
    %v101 = vsub.f32 %v100, %v98
    %v102 = vld [vmem:[%s2 + $0x1] sm:$0x1]
    %104 = vset.pattern.permute.xlu0 0
    %105 = vperm.xlu0 %104, %v102
    %v106 = vpop.permute.xlu0 %105
    %v108 = vmul.f32 %v101, %v106
    %v109 = vadd.f32 %v98, %v108
    %110 = vst [vmem:[#allocation2 + $0x1] sm:$0x1] %v109
    %s111 = sadd.s32 %s77, 2
    %s112 = sld [smem:[#allocation4 + %s111]]
    %s113 = sld [smem:[#allocation5 + %s111]]
    %s114 = scalar_lea.vmem [#allocation6], %s112
    %v115 = vld [vmem:[%s114] sm:$0x1]
    %s116 = scalar_lea.vmem [#allocation6], %s113
    %v117 = vld [vmem:[%s116] sm:$0x1]
    %v118 = vsub.f32 %v117, %v115
    %v119 = vld [vmem:[%s2 + $0x2] sm:$0x1]
    %121 = vset.pattern.permute.xlu0 0
    %122 = vperm.xlu0 %121, %v119
    %v123 = vpop.permute.xlu0 %122
    %v125 = vmul.f32 %v118, %v123
    %v126 = vadd.f32 %v115, %v125
    %127 = vst [vmem:[#allocation2 + $0x2] sm:$0x1] %v126
    %s128 = sadd.s32 %s77, 3
    %s129 = sld [smem:[#allocation4 + %s128]]
    %s130 = sld [smem:[#allocation5 + %s128]]
    %s131 = scalar_lea.vmem [#allocation6], %s129
    %v132 = vld [vmem:[%s131] sm:$0x1]
    %s133 = scalar_lea.vmem [#allocation6], %s130
    %v134 = vld [vmem:[%s133] sm:$0x1]
    %v135 = vsub.f32 %v134, %v132
    %v136 = vld [vmem:[%s2 + $0x3] sm:$0x1]
    %138 = vset.pattern.permute.xlu0 0
    %139 = vperm.xlu0 %138, %v136
    %v140 = vpop.permute.xlu0 %139
    %v142 = vmul.f32 %v135, %v140
    %v143 = vadd.f32 %v132, %v142
    %144 = vst [vmem:[#allocation2 + $0x3] sm:$0x1] %v143
    %s145 = sadd.s32 %s77, 4
    %s146 = sld [smem:[#allocation4 + %s145]]
    %s147 = sld [smem:[#allocation5 + %s145]]
    %s148 = scalar_lea.vmem [#allocation6], %s146
    %v149 = vld [vmem:[%s148] sm:$0x1]
    %s150 = scalar_lea.vmem [#allocation6], %s147
    %v151 = vld [vmem:[%s150] sm:$0x1]
    %v152 = vsub.f32 %v151, %v149
    %v153 = vld [vmem:[%s2 + $0x4] sm:$0x1]
    %155 = vset.pattern.permute.xlu0 0
    %156 = vperm.xlu0 %155, %v153
    %v157 = vpop.permute.xlu0 %156
    %v159 = vmul.f32 %v152, %v157
    %v160 = vadd.f32 %v149, %v159
    %161 = vst [vmem:[#allocation2 + $0x4] sm:$0x1] %v160
    %s162 = sadd.s32 %s77, 5
    %s163 = sld [smem:[#allocation4 + %s162]]
    %s164 = sld [smem:[#allocation5 + %s162]]
    %s165 = scalar_lea.vmem [#allocation6], %s163
    %v166 = vld [vmem:[%s165] sm:$0x1]
    %s167 = scalar_lea.vmem [#allocation6], %s164
    %v168 = vld [vmem:[%s167] sm:$0x1]
    %v169 = vsub.f32 %v168, %v166
    %v170 = vld [vmem:[%s2 + $0x5] sm:$0x1]
    %172 = vset.pattern.permute.xlu0 0
    %173 = vperm.xlu0 %172, %v170
    %v174 = vpop.permute.xlu0 %173
    %v176 = vmul.f32 %v169, %v174
    %v177 = vadd.f32 %v166, %v176
    %178 = vst [vmem:[#allocation2 + $0x5] sm:$0x1] %v177
    %s179 = sadd.s32 %s77, 6
    %s180 = sld [smem:[#allocation4 + %s179]]
    %s181 = sld [smem:[#allocation5 + %s179]]
    %s182 = scalar_lea.vmem [#allocation6], %s180
    %v183 = vld [vmem:[%s182] sm:$0x1]
    %s184 = scalar_lea.vmem [#allocation6], %s181
    %v185 = vld [vmem:[%s184] sm:$0x1]
    %v186 = vsub.f32 %v185, %v183
    %v187 = vld [vmem:[%s2 + $0x6] sm:$0x1]
    %189 = vset.pattern.permute.xlu0 0
    %190 = vperm.xlu0 %189, %v187
    %v191 = vpop.permute.xlu0 %190
    %v193 = vmul.f32 %v186, %v191
    %v194 = vadd.f32 %v183, %v193
    %195 = vst [vmem:[#allocation2 + $0x6] sm:$0x1] %v194
    %s196 = sadd.s32 %s77, 7
    %s197 = sld [smem:[#allocation4 + %s196]]
    %s198 = sld [smem:[#allocation5 + %s196]]
    %s199 = scalar_lea.vmem [#allocation6], %s197
    %v200 = vld [vmem:[%s199] sm:$0x1]
    %s201 = scalar_lea.vmem [#allocation6], %s198
    %v202 = vld [vmem:[%s201] sm:$0x1]
    %v203 = vsub.f32 %v202, %v200
    %v204 = vld [vmem:[%s2 + $0x7] sm:$0x1]
    %206 = vset.pattern.permute.xlu0 0
    %207 = vperm.xlu0 %206, %v204
    %v208 = vpop.permute.xlu0 %207
    %v210 = vmul.f32 %v203, %v208
    %v211 = vadd.f32 %v200, %v210
    %212 = vst [vmem:[#allocation2 + $0x7] sm:$0x1] %v211
    %v213 = vld [vmem:[#allocation2] sm:$0xff]
    %v214 = vld [vmem:[#allocation9] sm:$0xff]
    %v215 = vld [vmem:[#allocation9 + $0x8] sm:$0xff]
    %v216 = vld [vmem:[#allocation9 + $0x10] sm:$0xff]
    %v217 = vld [vmem:[#allocation9 + $0x18] sm:$0xff]
    %v218 = vld [vmem:[#allocation9 + $0x20] sm:$0xff]
    %v219 = vld [vmem:[#allocation9 + $0x28] sm:$0xff]
    %v220 = vld [vmem:[#allocation9 + $0x30] sm:$0xff]
    %v221 = vld [vmem:[#allocation9 + $0x38] sm:$0xff]
    %v222 = vld [vmem:[#allocation9 + $0x40] sm:$0xff]
    %v223 = vld [vmem:[#allocation9 + $0x48] sm:$0xff]
    %v224 = vld [vmem:[#allocation9 + $0x50] sm:$0xff]
    %v225 = vld [vmem:[#allocation9 + $0x58] sm:$0xff]
    %v226 = vld [vmem:[#allocation9 + $0x60] sm:$0xff]
    %v227 = vld [vmem:[#allocation9 + $0x68] sm:$0xff]
    %v228 = vld [vmem:[#allocation9 + $0x70] sm:$0xff]
    %v229 = vld [vmem:[#allocation9 + $0x78] sm:$0xff]
    %v230 = vld [vmem:[%s5] sm:$0x1]
    %v232 = vlaneseq
    %v233 = vshrl.u32 %v232, 7
    %v234 = vsub.s32 0, %v233
    %v235 = vrot.slane %v230, %v234
    %237 = vmatprep.subr.mxu0 0.0
    %238 = vmatpush1.msra.mxu0 %v214
    %239 = vmatprep.subr.mxu0 0.0
    %240 = vmatpush1.msra.mxu0 %v215
    %241 = vmatprep.subr.mxu0 0.0
    %242 = vmatpush1.msra.mxu0 %v216
    %243 = vmatprep.subr.mxu0 0.0
    %244 = vmatpush1.msra.mxu0 %v217
    %245 = vmatprep.subr.mxu0 0.0
    %246 = vmatpush1.msra.mxu0 %v218
    %247 = vmatprep.subr.mxu0 0.0
    %248 = vmatpush1.msra.mxu0 %v219
    %249 = vmatprep.subr.mxu0 0.0
    %250 = vmatpush1.msra.mxu0 %v220
    %251 = vmatprep.subr.mxu0 0.0
    %252 = vmatpush1.msra.mxu0 %v221
    %253 = vmatprep.subr.mxu0 0.0
    %254 = vmatpush1.msra.mxu0 %v222
    %255 = vmatprep.subr.mxu0 0.0
    %256 = vmatpush1.msra.mxu0 %v223
    %257 = vmatprep.subr.mxu0 0.0
    %258 = vmatpush1.msra.mxu0 %v224
    %259 = vmatprep.subr.mxu0 0.0
    %260 = vmatpush1.msra.mxu0 %v225
    %261 = vmatprep.subr.mxu0 0.0
    %262 = vmatpush1.msra.mxu0 %v226
    %263 = vmatprep.subr.mxu0 0.0
    %264 = vmatpush1.msra.mxu0 %v227
    %265 = vmatprep.subr.mxu0 0.0
    %266 = vmatpush1.msra.mxu0 %v228
    %267 = vmatprep.subr.mxu0 0.0
    %268 = vmatpush1.msra.mxu0 %v229
    %269 = vmatprep.subr.mxu0 0.0
    %270 = vmatpush1.msra.mxu0 0.0
    %271 = vmatprep.subr.mxu0 0.0
    %272 = vmatpush1.msra.mxu0 0.0
    %273 = vmatprep.subr.mxu0 0.0
    %274 = vmatpush1.msra.mxu0 0.0
    %275 = vmatprep.subr.mxu0 0.0
    %276 = vmatpush1.msra.mxu0 0.0
    %277 = vmatprep.subr.mxu0 0.0
    %278 = vmatpush1.msra.mxu0 0.0
    %279 = vmatprep.subr.mxu0 0.0
    %280 = vmatpush1.msra.mxu0 0.0
    %281 = vmatprep.subr.mxu0 0.0
    %282 = vmatpush1.msra.mxu0 0.0
    %283 = vmatprep.subr.mxu0 0.0
    %284 = vmatpush1.msra.mxu0 0.0
    %285 = vmatprep.subr.mxu0 0.0
    %286 = vmatpush1.msra.mxu0 0.0
    %287 = vmatprep.subr.mxu0 0.0
    %288 = vmatpush1.msra.mxu0 0.0
    %289 = vmatprep.subr.mxu0 0.0
    %290 = vmatpush1.msra.mxu0 0.0
    %291 = vmatprep.subr.mxu0 0.0
    %292 = vmatpush1.msra.mxu0 0.0
    %293 = vmatprep.subr.mxu0 0.0
    %294 = vmatpush1.msra.mxu0 0.0
    %295 = vmatprep.subr.mxu0 0.0
    %296 = vmatpush1.msra.mxu0 0.0
    %297 = vmatprep.subr.mxu0 0.0
    %298 = vmatpush1.msra.mxu0 0.0
    %299 = vmatprep.subr.mxu0 0.0
    %300 = vmatpush1.msra.mxu0 0.0
    %301 = vmatprep.mubr.f32.mxu0 0.0
    %302 = vmatmul.mubr.f32.gmra.mrb[0].mxu0 %v213
    %v303 = vpop.f32.mrb[0].mxu0
    %v304 = vadd.f32 %v235, %v303
    %v305 = vpop.f32.mrb[0].mxu0
    %306 = vdwg.mxu0
    %vm307 = vcmp.gt.f32.partialorder %v304, 0.0
    %v308 = vmul.f32 %v304, 0.01
    %v309 = vsel %vm307, %v304, %v308
    %v310 = vadd.f32 %v309, %v213
    %v311 = vld [vmem:[#allocation11] sm:$0xff]
    %v312 = vld [vmem:[#allocation11 + $0x8] sm:$0xff]
    %v313 = vld [vmem:[#allocation11 + $0x10] sm:$0xff]
    %v314 = vld [vmem:[#allocation11 + $0x18] sm:$0xff]
    %v315 = vld [vmem:[#allocation11 + $0x20] sm:$0xff]
    %v316 = vld [vmem:[#allocation11 + $0x28] sm:$0xff]
    %v317 = vld [vmem:[#allocation11 + $0x30] sm:$0xff]
    %v318 = vld [vmem:[#allocation11 + $0x38] sm:$0xff]
    %v319 = vld [vmem:[#allocation11 + $0x40] sm:$0xff]
    %v320 = vld [vmem:[#allocation11 + $0x48] sm:$0xff]
    %v321 = vld [vmem:[#allocation11 + $0x50] sm:$0xff]
    %v322 = vld [vmem:[#allocation11 + $0x58] sm:$0xff]
    %v323 = vld [vmem:[#allocation11 + $0x60] sm:$0xff]
    %v324 = vld [vmem:[#allocation11 + $0x68] sm:$0xff]
    %v325 = vld [vmem:[#allocation11 + $0x70] sm:$0xff]
    %v326 = vld [vmem:[#allocation11 + $0x78] sm:$0xff]
    %v327 = vld [vmem:[%s7] sm:$0x1]
    %v329 = vlaneseq
    %v330 = vshrl.u32 %v329, 7
    %v331 = vsub.s32 0, %v330
    %v332 = vrot.slane %v327, %v331
    %334 = vmatprep.subr.mxu0 0.0
    %335 = vmatpush1.msra.mxu0 %v311
    %336 = vmatprep.subr.mxu0 0.0
    %337 = vmatpush1.msra.mxu0 %v312
    %338 = vmatprep.subr.mxu0 0.0
    %339 = vmatpush1.msra.mxu0 %v313
    %340 = vmatprep.subr.mxu0 0.0
    %341 = vmatpush1.msra.mxu0 %v314
    %342 = vmatprep.subr.mxu0 0.0
    %343 = vmatpush1.msra.mxu0 %v315
    %344 = vmatprep.subr.mxu0 0.0
    %345 = vmatpush1.msra.mxu0 %v316
    %346 = vmatprep.subr.mxu0 0.0
    %347 = vmatpush1.msra.mxu0 %v317
    %348 = vmatprep.subr.mxu0 0.0
    %349 = vmatpush1.msra.mxu0 %v318
    %350 = vmatprep.subr.mxu0 0.0
    %351 = vmatpush1.msra.mxu0 %v319
    %352 = vmatprep.subr.mxu0 0.0
    %353 = vmatpush1.msra.mxu0 %v320
    %354 = vmatprep.subr.mxu0 0.0
    %355 = vmatpush1.msra.mxu0 %v321
    %356 = vmatprep.subr.mxu0 0.0
    %357 = vmatpush1.msra.mxu0 %v322
    %358 = vmatprep.subr.mxu0 0.0
    %359 = vmatpush1.msra.mxu0 %v323
    %360 = vmatprep.subr.mxu0 0.0
    %361 = vmatpush1.msra.mxu0 %v324
    %362 = vmatprep.subr.mxu0 0.0
    %363 = vmatpush1.msra.mxu0 %v325
    %364 = vmatprep.subr.mxu0 0.0
    %365 = vmatpush1.msra.mxu0 %v326
    %366 = vmatprep.subr.mxu0 0.0
    %367 = vmatpush1.msra.mxu0 0.0
    %368 = vmatprep.subr.mxu0 0.0
    %369 = vmatpush1.msra.mxu0 0.0
    %370 = vmatprep.subr.mxu0 0.0
    %371 = vmatpush1.msra.mxu0 0.0
    %372 = vmatprep.subr.mxu0 0.0
    %373 = vmatpush1.msra.mxu0 0.0
    %374 = vmatprep.subr.mxu0 0.0
    %375 = vmatpush1.msra.mxu0 0.0
    %376 = vmatprep.subr.mxu0 0.0
    %377 = vmatpush1.msra.mxu0 0.0
    %378 = vmatprep.subr.mxu0 0.0
    %379 = vmatpush1.msra.mxu0 0.0
    %380 = vmatprep.subr.mxu0 0.0
    %381 = vmatpush1.msra.mxu0 0.0
    %382 = vmatprep.subr.mxu0 0.0
    %383 = vmatpush1.msra.mxu0 0.0
    %384 = vmatprep.subr.mxu0 0.0
    %385 = vmatpush1.msra.mxu0 0.0
    %386 = vmatprep.subr.mxu0 0.0
    %387 = vmatpush1.msra.mxu0 0.0
    %388 = vmatprep.subr.mxu0 0.0
    %389 = vmatpush1.msra.mxu0 0.0
    %390 = vmatprep.subr.mxu0 0.0
    %391 = vmatpush1.msra.mxu0 0.0
    %392 = vmatprep.subr.mxu0 0.0
    %393 = vmatpush1.msra.mxu0 0.0
    %394 = vmatprep.subr.mxu0 0.0
    %395 = vmatpush1.msra.mxu0 0.0
    %396 = vmatprep.subr.mxu0 0.0
    %397 = vmatpush1.msra.mxu0 0.0
    %398 = vmatprep.mubr.f32.mxu0 0.0
    %399 = vmatmul.mubr.f32.gmra.mrb[0].mxu0 %v310
    %v400 = vpop.f32.mrb[0].mxu0
    %v401 = vadd.f32 %v332, %v400
    %v402 = vpop.f32.mrb[0].mxu0
    %403 = vdwg.mxu0
    %vm404 = vcmp.gt.f32.partialorder %v401, 0.0
    %v405 = vmul.f32 %v401, 0.01
    %v406 = vsel %vm404, %v401, %v405
    %v407 = vadd.f32 %v406, %v310
    %408 = vst [vmem:[#allocation12] sm:$0xff] %v407
    // Predicated region
    $region38: #{tpu_custom_call.1} parent=1 // pred_check
      _
    $region39: #{tpu_custom_call.1} parent=1 // pred_check_branch
      %410 = sbr.rel (0) target = $region41
    $region40: #{tpu_custom_call.1} parent=1 // pred_region
      %s412 = ssub.s32 128, 128
      %413 = vsyncadd [#allocation8], %s412
      %s415 = sshll.u32 [#allocation12], 4
      %s416 = int_to_ptr.vmem [resolvable:$true] %s415
      %418 = dma.vmem_to_hbm [thread:$0]  %s416, 128, %s8, [#allocation8]
    $region41: #{tpu_custom_call.1} parent=1 // pred_fallthru
      _
    // Predicated region
    $region42: #{tpu_custom_call.1} parent=1 // pred_check
      _
    $region43: #{tpu_custom_call.1} parent=1 // pred_check_branch
      %420 = sbr.rel (0) target = $region45
    $region44: #{tpu_custom_call.1} parent=1 // pred_region
      %421 = dma.done [#allocation8], 128
    $region45: #{tpu_custom_call.1} parent=1 // pred_fallthru
      _
    %422 = vsyncpa [#allocation7], 1
    %423 = vsyncpa [#allocation10], 1
    %424 = vsyncpa [#allocation8], 1

</llo_original>
